<compile_context>
chip_gen: v5e
topology: v5e:2x2
jax: 0.10.0
libtpu: 0.0.40
codegen_flags: <defaults>
</compile_context>

<pallas_src>
import numpy as np
import jax
import jax.numpy as jnp
from jax.experimental import pallas as pl
from jax.experimental.pallas import tpu as pltpu


# ---------------------------------------------------------------------------
# Config (mirrors LossConfig)
# ---------------------------------------------------------------------------
TEMP = 0.1          # contrastive_loss_temperature  (self.k)
K_NEG = 4           # num_contrastive_loss_negative_samples (self.K)
ALPHA = 0.1         # loss_alpha (self.a)
G_GROUPS = 2        # num_code_vector_groups (self.G)
V_PER_GROUP = 8     # num_code_vectors_per_group (self.V)

COS_EPS = 1e-8      # nn.CosineSimilarity eps (clamp on the norm product)


def _round_up(x, m):
    return (x + m - 1) // m * m


# ---------------------------------------------------------------------------
# Pallas kernel (factory closes over static K+1)
# ---------------------------------------------------------------------------
def _make_kernel(kp1):
    eps = np.float32(COS_EPS)

    def kernel(t_ref, cand_ref, scale_ref, out_ref):
        # t_ref:     (tn, d)        target rows (tile)
        # cand_ref:  (kp1, tn, d)   K+1 candidate label rows per target row
        # scale_ref: (tn, kp1)      f32: rsqrt(max(||label||^2, eps)) / temp
        # out_ref:   (tn, 1)        f32 per-row contrastive loss
        t = t_ref[...].astype(jnp.float32)                       # (tn, d)
        t_sq = jnp.sum(t * t, axis=-1, keepdims=True)            # (tn, 1)
        # per-factor eps clamp: max(||t||,1e-4)*max(||l||,1e-4) >= 1e-8 = eps
        t_factor = jax.lax.rsqrt(jnp.maximum(t_sq, eps))         # (tn, 1)

        # kp1 is static (K+1 = 5) -> fully unrolled; every op is a clean 2D
        # (tn, d) multiply + lane reduce or a (tn, 1) scalar-per-row op.
        scaled = []
        for k in range(kp1):
            c = cand_ref[k].astype(jnp.float32)                  # (tn, d)
            dot_k = jnp.sum(t * c, axis=-1, keepdims=True)       # (tn, 1)
            scaled.append(dot_k * t_factor * scale_ref[:, k:k + 1])

        # row loss = -log( exp(pos) / sum_k exp(scaled_k) )
        #          = max-subtracted logsumexp(scaled) - scaled[0]
        # (candidate 0 is the positive; duplicates, if any, are counted just
        #  like the reference denominator).
        m = scaled[0]
        for k in range(1, kp1):
            m = jnp.maximum(m, scaled[k])
        se = jnp.exp(scaled[0] - m)
        for k in range(1, kp1):
            se = se + jnp.exp(scaled[k] - m)
        out_ref[...] = m + jnp.log(se) - scaled[0]

    return kernel


# ---------------------------------------------------------------------------
# pallas_call wrapper
# ---------------------------------------------------------------------------
def wav2vec2_loss_pallas(targets, labels, cand_idx, perplexity):
    n, d = targets.shape
    kp1 = cand_idx.shape[1]

    # Row tile: multiple of 8 sublanes.  tn=256 amortizes per-step overhead;
    # per-tile VMEM is only (kp1+1)*tn*d plus small intermediates (no resident
    # N-sized blocks), so this fits every generation's scoped-VMEM budget.
    tn = 256 if n >= 256 else _round_up(n, 8)
    npad = _round_up(n, tn)

    # --- wrapper-side precompute (all O(N*(K+1)*D) or smaller) ---------------
    # Gather the K+1 candidate label rows up front so kernel work scales with
    # K+1 instead of N.  (K+1)*N*D extra HBM traffic is negligible vs the
    # O(N^2) VALU/EUP work it removes.
    cand_labels = labels[cand_idx.T]                                  # (kp1, n, d)
    # Per-label inverse norm with the cosine eps as a per-factor clamp, and
    # 1/temperature folded in -> a single multiply chain in the kernel.
    lab_sq = jnp.sum(labels.astype(jnp.float32) ** 2, axis=-1)        # (n,)
    inv_lab = jax.lax.rsqrt(jnp.maximum(lab_sq, jnp.float32(COS_EPS)))
    cand_scale = inv_lab[cand_idx] * jnp.float32(1.0 / TEMP)          # (n, kp1)

    targets_p = jnp.pad(targets, ((0, npad - n), (0, 0)))
    cand_labels_p = jnp.pad(cand_labels, ((0, 0), (0, npad - n), (0, 0)))
    cand_scale_p = jnp.pad(cand_scale, ((0, npad - n), (0, 0)))

    row_loss = pl.pallas_call(
        _make_kernel(kp1),
        out_shape=jax.ShapeDtypeStruct((npad, 1), jnp.float32),
        grid=(npad // tn,),
        in_specs=[
            pl.BlockSpec((tn, d), lambda i: (i, 0)),            # targets (tiled over N)
            pl.BlockSpec((kp1, tn, d), lambda i: (0, i, 0)),    # K+1 candidate rows
            pl.BlockSpec((tn, kp1), lambda i: (i, 0)),          # inv-norm / temp scale
        ],
        out_specs=pl.BlockSpec((tn, 1), lambda i: (i, 0)),      # per-row loss
        compiler_params=pltpu.CompilerParams(
            # Independent tiles, no shared accumulator -> fully parallel grid
            # axis (v7x 2-TC split for free).
            dimension_semantics=("parallel",),
            # Explicit budget with headroom under v7x's 64 MiB physical VMEM.
            vmem_limit_bytes=48 * 1024 * 1024),
    )(targets_p, cand_labels_p, cand_scale_p)

    contrastive = jnp.sum(row_loss[:n, 0]) / jnp.float32(n)

    # Diversity / entropy term: 16 elements of plain JAX (kept out of kernel).
    p = perplexity.astype(jnp.float32)
    entropy = -jnp.sum(p * jnp.log(p + jnp.float32(1e-9)))
    return contrastive + jnp.float32(ALPHA) * entropy / jnp.float32(G_GROUPS * V_PER_GROUP)


# ---------------------------------------------------------------------------
# Plain-JAX glue: mask gather + vectorized negative sampling
# ---------------------------------------------------------------------------
def sample_candidate_indices(n, key):
    """(N, K+1) int32 candidate table.  Column 0 is the row itself (positive
    label); columns 1..K are K distinct rows sampled uniformly from the other
    N-1 rows (same distribution as the PyTorch randperm sampler)."""
    if n - 1 < K_NEG:
        raise ValueError("need at least K+1 masked frames for negative sampling")
    keys = jax.random.split(key, n)

    def per_row(row, k):
        offs = jax.random.permutation(k, n - 1)[:K_NEG] + 1   # offsets in [1, n-1]
        return (row + offs) % n

    negs = jax.vmap(per_row)(jnp.arange(n), keys)             # (n, K)
    pos = jnp.arange(n)[:, None]
    return jnp.concatenate([pos, negs], axis=1).astype(jnp.int32)


def wav2vec2_loss(encoder_out, quantized_features, perplexity,
                  time_mask_indices, sample_key):
    # TODO(synk): boolean-mask gather has a data-dependent output shape, so it
    # is done with a concrete mask at trace time (N is static per mask).
    mask_np = np.asarray(time_mask_indices)
    b_idx, t_idx = np.nonzero(mask_np)
    targets = encoder_out[b_idx, t_idx]             # (N, D)
    labels = quantized_features[b_idx, t_idx]       # (N, D)

    cand_idx = sample_candidate_indices(targets.shape[0], sample_key)  # (N, K+1)
    return wav2vec2_loss_pallas(targets, labels, cand_idx, perplexity)


# ---------------------------------------------------------------------------
# Pure-JAX reference (mirrors the PyTorch module arithmetic exactly)
# ---------------------------------------------------------------------------
def _reference_loss(targets, labels, cand_idx, perplexity):
    samples = labels[cand_idx]                                 # (N, K+1, D)
    t_norm = jnp.sqrt(jnp.sum(targets * targets, axis=-1))
    s_norm = jnp.sqrt(jnp.sum(samples * samples, axis=-1))
    dots = jnp.sum(targets[:, None, :] * samples, axis=-1)
    sim = dots / jnp.maximum(t_norm[:, None] * s_norm, COS_EPS)
    scaled = sim / TEMP
    contrastive = jnp.mean(-jnp.log(jnp.exp(scaled[:, 0]) /
                                    jnp.sum(jnp.exp(scaled), axis=1)))
    entropy = -jnp.sum(perplexity * jnp.log(perplexity + 1e-9))
    return contrastive + ALPHA * entropy / (G_GROUPS * V_PER_GROUP)


if __name__ == "__main__":
    B, T, D = 2, 8, 32

    key = jax.random.PRNGKey(0)
    k_enc, k_quant, k_perp, k_samp = jax.random.split(key, 4)

    encoder_out = jax.random.normal(k_enc, (B, T, D), dtype=jnp.float32)
    quantized_features = jax.random.normal(k_quant, (B, T, D), dtype=jnp.float32)

    # perplexity: positive, sums to 1 per group (G, V)
    raw = jax.random.uniform(k_perp, (G_GROUPS, V_PER_GROUP), dtype=jnp.float32) + 0.1
    perplexity = raw / jnp.sum(raw, axis=-1, keepdims=True)

    # deterministic time mask: every other frame masked -> N = B*T/2 = 8 (> K)
    time_mask_indices = jnp.tile(jnp.arange(T) % 2 == 0, (B, 1))

    loss = wav2vec2_loss(encoder_out, quantized_features, perplexity,
                         time_mask_indices, k_samp)
    loss = jax.block_until_ready(loss)

    # silent sanity check vs pure-JAX reference (same gathered rows / indices)
    mask_np = np.asarray(time_mask_indices)
    b_idx, t_idx = np.nonzero(mask_np)
    tgt = encoder_out[b_idx, t_idx]
    lab = quantized_features[b_idx, t_idx]
    cand_idx = sample_candidate_indices(tgt.shape[0], k_samp)
    ref = _reference_loss(tgt, lab, cand_idx, perplexity)
    assert np.allclose(np.asarray(loss), np.asarray(ref), rtol=2e-3, atol=2e-3), \
        (float(loss), float(ref))

    print("KERNEL_OK")
</pallas_src>

<mosaic_0001>
module attributes {stable_mosaic.version = 11 : i64} {
  func.func @kernel(%arg0: i32, %arg1: memref<8x32xf32, #tpu.memory_space<vmem>>, %arg2: memref<5x8x32xf32, #tpu.memory_space<vmem>>, %arg3: memref<8x5xf32, #tpu.memory_space<vmem>>, %arg4: memref<8x1xf32, #tpu.memory_space<vmem>>) attributes {dimension_semantics = [#tpu.dimension_semantics<parallel>], iteration_bounds = array<i64: 1>, scalar_prefetch = 0 : i64, scratch_operands = 0 : i64, tpu.core_type = #tpu.core_type<tc>, window_params = [{transform_indices = @transform_0, window_bounds = array<i64: 8, 32>}, {transform_indices = @transform_1, window_bounds = array<i64: 5, 8, 32>}, {transform_indices = @transform_2, window_bounds = array<i64: 8, 5>}, {transform_indices = @transform_3, window_bounds = array<i64: 8, 1>}]} {
    %c0 = arith.constant 0 : index
    %c0_0 = arith.constant 0 : index
    %0 = vector.load %arg1[%c0, %c0_0] : memref<8x32xf32, #tpu.memory_space<vmem>>, vector<8x32xf32>
    %1 = arith.mulf %0, %0 : vector<8x32xf32>
    %cst = arith.constant dense<0.000000e+00> : vector<8xf32>
    %2 = vector.multi_reduction <add>, %1, %cst [1] : vector<8x32xf32> to vector<8xf32>
    %3 = vector.shape_cast %2 : vector<8xf32> to vector<8x1xf32>
    %cst_1 = arith.constant 9.99999993E-9 : f32
    %4 = vector.broadcast %cst_1 : f32 to vector<8x1xf32>
    %5 = arith.maximumf %3, %4 : vector<8x1xf32>
    %6 = math.rsqrt %5 : vector<8x1xf32>
    %c0_2 = arith.constant 0 : index
    %c0_3 = arith.constant 0 : index
    %c0_4 = arith.constant 0 : index
    %7 = vector.load %arg2[%c0_2, %c0_3, %c0_4] : memref<5x8x32xf32, #tpu.memory_space<vmem>>, vector<1x8x32xf32>
    %8 = vector.shape_cast %7 : vector<1x8x32xf32> to vector<8x32xf32>
    %9 = arith.mulf %0, %8 : vector<8x32xf32>
    %cst_5 = arith.constant dense<0.000000e+00> : vector<8xf32>
    %10 = vector.multi_reduction <add>, %9, %cst_5 [1] : vector<8x32xf32> to vector<8xf32>
    %11 = vector.shape_cast %10 : vector<8xf32> to vector<8x1xf32>
    %12 = arith.mulf %11, %6 : vector<8x1xf32>
    %c0_6 = arith.constant 0 : index
    %c0_7 = arith.constant 0 : index
    %13 = vector.load %arg3[%c0_6, %c0_7] : memref<8x5xf32, #tpu.memory_space<vmem>>, vector<8x1xf32>
    %14 = arith.mulf %12, %13 : vector<8x1xf32>
    %c1 = arith.constant 1 : index
    %c0_8 = arith.constant 0 : index
    %c0_9 = arith.constant 0 : index
    %15 = vector.load %arg2[%c1, %c0_8, %c0_9] : memref<5x8x32xf32, #tpu.memory_space<vmem>>, vector<1x8x32xf32>
    %16 = vector.shape_cast %15 : vector<1x8x32xf32> to vector<8x32xf32>
    %17 = arith.mulf %0, %16 : vector<8x32xf32>
    %cst_10 = arith.constant dense<0.000000e+00> : vector<8xf32>
    %18 = vector.multi_reduction <add>, %17, %cst_10 [1] : vector<8x32xf32> to vector<8xf32>
    %19 = vector.shape_cast %18 : vector<8xf32> to vector<8x1xf32>
    %20 = arith.mulf %19, %6 : vector<8x1xf32>
    %c0_11 = arith.constant 0 : index
    %c1_12 = arith.constant 1 : index
    %21 = vector.load %arg3[%c0_11, %c1_12] : memref<8x5xf32, #tpu.memory_space<vmem>>, vector<8x1xf32>
    %22 = arith.mulf %20, %21 : vector<8x1xf32>
    %c2 = arith.constant 2 : index
    %c0_13 = arith.constant 0 : index
    %c0_14 = arith.constant 0 : index
    %23 = vector.load %arg2[%c2, %c0_13, %c0_14] : memref<5x8x32xf32, #tpu.memory_space<vmem>>, vector<1x8x32xf32>
    %24 = vector.shape_cast %23 : vector<1x8x32xf32> to vector<8x32xf32>
    %25 = arith.mulf %0, %24 : vector<8x32xf32>
    %cst_15 = arith.constant dense<0.000000e+00> : vector<8xf32>
    %26 = vector.multi_reduction <add>, %25, %cst_15 [1] : vector<8x32xf32> to vector<8xf32>
    %27 = vector.shape_cast %26 : vector<8xf32> to vector<8x1xf32>
    %28 = arith.mulf %27, %6 : vector<8x1xf32>
    %c0_16 = arith.constant 0 : index
    %c2_17 = arith.constant 2 : index
    %29 = vector.load %arg3[%c0_16, %c2_17] : memref<8x5xf32, #tpu.memory_space<vmem>>, vector<8x1xf32>
    %30 = arith.mulf %28, %29 : vector<8x1xf32>
    %c3 = arith.constant 3 : index
    %c0_18 = arith.constant 0 : index
    %c0_19 = arith.constant 0 : index
    %31 = vector.load %arg2[%c3, %c0_18, %c0_19] : memref<5x8x32xf32, #tpu.memory_space<vmem>>, vector<1x8x32xf32>
    %32 = vector.shape_cast %31 : vector<1x8x32xf32> to vector<8x32xf32>
    %33 = arith.mulf %0, %32 : vector<8x32xf32>
    %cst_20 = arith.constant dense<0.000000e+00> : vector<8xf32>
    %34 = vector.multi_reduction <add>, %33, %cst_20 [1] : vector<8x32xf32> to vector<8xf32>
    %35 = vector.shape_cast %34 : vector<8xf32> to vector<8x1xf32>
    %36 = arith.mulf %35, %6 : vector<8x1xf32>
    %c0_21 = arith.constant 0 : index
    %c3_22 = arith.constant 3 : index
    %37 = vector.load %arg3[%c0_21, %c3_22] : memref<8x5xf32, #tpu.memory_space<vmem>>, vector<8x1xf32>
    %38 = arith.mulf %36, %37 : vector<8x1xf32>
    %c4 = arith.constant 4 : index
    %c0_23 = arith.constant 0 : index
    %c0_24 = arith.constant 0 : index
    %39 = vector.load %arg2[%c4, %c0_23, %c0_24] : memref<5x8x32xf32, #tpu.memory_space<vmem>>, vector<1x8x32xf32>
    %40 = vector.shape_cast %39 : vector<1x8x32xf32> to vector<8x32xf32>
    %41 = arith.mulf %0, %40 : vector<8x32xf32>
    %cst_25 = arith.constant dense<0.000000e+00> : vector<8xf32>
    %42 = vector.multi_reduction <add>, %41, %cst_25 [1] : vector<8x32xf32> to vector<8xf32>
    %43 = vector.shape_cast %42 : vector<8xf32> to vector<8x1xf32>
    %44 = arith.mulf %43, %6 : vector<8x1xf32>
    %c0_26 = arith.constant 0 : index
    %c4_27 = arith.constant 4 : index
    %45 = vector.load %arg3[%c0_26, %c4_27] : memref<8x5xf32, #tpu.memory_space<vmem>>, vector<8x1xf32>
    %46 = arith.mulf %44, %45 : vector<8x1xf32>
    %47 = arith.maximumf %14, %22 : vector<8x1xf32>
    %48 = arith.maximumf %47, %30 : vector<8x1xf32>
    %49 = arith.maximumf %48, %38 : vector<8x1xf32>
    %50 = arith.maximumf %49, %46 : vector<8x1xf32>
    %51 = arith.subf %14, %50 : vector<8x1xf32>
    %52 = math.exp %51 : vector<8x1xf32>
    %53 = arith.subf %22, %50 : vector<8x1xf32>
    %54 = math.exp %53 : vector<8x1xf32>
    %55 = arith.addf %52, %54 : vector<8x1xf32>
    %56 = arith.subf %30, %50 : vector<8x1xf32>
    %57 = math.exp %56 : vector<8x1xf32>
    %58 = arith.addf %55, %57 : vector<8x1xf32>
    %59 = arith.subf %38, %50 : vector<8x1xf32>
    %60 = math.exp %59 : vector<8x1xf32>
    %61 = arith.addf %58, %60 : vector<8x1xf32>
    %62 = arith.subf %46, %50 : vector<8x1xf32>
    %63 = math.exp %62 : vector<8x1xf32>
    %64 = arith.addf %61, %63 : vector<8x1xf32>
    %65 = math.log %64 : vector<8x1xf32>
    %66 = arith.addf %50, %65 : vector<8x1xf32>
    %67 = arith.subf %66, %14 : vector<8x1xf32>
    %c0_28 = arith.constant 0 : index
    %c0_29 = arith.constant 0 : index
    %68 = vector.load %arg4[%c0_28, %c0_29] : memref<8x1xf32, #tpu.memory_space<vmem>>, vector<8x1xf32>
    tpu.vector_store %arg4[%c0_28, %c0_29], %67 {strides = array<i32>} : memref<8x1xf32, #tpu.memory_space<vmem>>, vector<8x1xf32>,
    return
  }
  func.func @transform_0(%arg0: i32) -> (i32, i32) {
    %c0_i32 = arith.constant 0 : i32
    %c0_i32_0 = arith.constant 0 : i32
    return %arg0, %c0_i32 : i32, i32
  }
  func.func @transform_1(%arg0: i32) -> (i32, i32, i32) {
    %c0_i32 = arith.constant 0 : i32
    %c0_i32_0 = arith.constant 0 : i32
    %c0_i32_1 = arith.constant 0 : i32
    return %c0_i32, %arg0, %c0_i32_0 : i32, i32, i32
  }
  func.func @transform_2(%arg0: i32) -> (i32, i32) {
    %c0_i32 = arith.constant 0 : i32
    %c0_i32_0 = arith.constant 0 : i32
    return %arg0, %c0_i32 : i32, i32
  }
  func.func @transform_3(%arg0: i32) -> (i32, i32) {
    %c0_i32 = arith.constant 0 : i32
    %c0_i32_0 = arith.constant 0 : i32
    return %arg0, %c0_i32 : i32, i32
  }
}

</mosaic_0001>

<llo_original>
// kernel: tpu_custom_call.1
$region0: #{tpu_custom_call.1}
  #allocation0 [shape = 'u32[]', space=smem, size = 0x4, offset = 0x4, fixed_abs, tag = 'smem constant byte address 0x4 - core index']
  #allocation1 [shape = 'u32[72,128]{1,0:T(1,128)}', space=vmem, size = 0x9000, scoped, tag = 'internal scratch']
  %s0 = inlined_call_operand.hbm [shape: f32[8,32], index: 0, kind: input, shape index: {}]
  %s1 = inlined_call_operand.hbm [shape: f32[5,8,32], index: 1, kind: input, shape index: {}]
  %s2 = inlined_call_operand.hbm [shape: f32[8,5], index: 2, kind: input, shape index: {}]
  %s3 = inlined_call_operand.vmem [shape: f32[8,1], index: 3, kind: output, shape index: {}]
  %s4 = sld [smem:[#allocation0]]
  $region34: #{tpu_custom_call.1} parent=0
    _
  %s6 = ssub.s32 1, %s4
  %s7 = scalar_select 0, %s6, %s4
  $region1: #{tpu_custom_call.1} parent=0
    #allocation2 [shape = 'u8[4096]{0}', space=vmem, size = 0x1000, scoped, tag = 'input window, operand 0, single buffered']
    #allocation3 [shape = 's32[1]{0}', space=sflag, size = 0x4, scoped, tag = 'scoped memory for tpu_custom_call.1']
    #allocation4 [shape = 'u8[20480]{0}', space=vmem, size = 0x5000, scoped, tag = 'input window, operand 1, single buffered']
    #allocation5 [shape = 's32[1]{0}', space=sflag, size = 0x4, scoped, tag = 'scoped memory for tpu_custom_call.1']
    #allocation6 [shape = 'u8[4096]{0}', space=vmem, size = 0x1000, scoped, tag = 'input window, operand 2, single buffered']
    %8 = vsyncpa [#allocation3], 0
    %9 = vsyncpa [#allocation5], 0
    // Predicated region
    $region2: #{tpu_custom_call.1} parent=1 // pred_check
      _
    $region3: #{tpu_custom_call.1} parent=1 // pred_check_branch
      %11 = sbr.rel (0) target = $region5
    $region4: #{tpu_custom_call.1} parent=1 // pred_region
      %13 = vsyncadd [#allocation3], 0
      %s15 = sshll.u32 %s0, 4
      %s16 = int_to_ptr.hbm [resolvable:$true] %s15
      %s17 = sshll.u32 [#allocation2], 4
      %s18 = int_to_ptr.vmem [resolvable:$true] %s17
      %20 = dma.hbm_to_vmem [thread:$0]  %s16, 128, %s18, [#allocation3]
    $region5: #{tpu_custom_call.1} parent=1 // pred_fallthru
      _
    // Predicated region
    $region6: #{tpu_custom_call.1} parent=1 // pred_check
      _
    $region7: #{tpu_custom_call.1} parent=1 // pred_check_branch
      %22 = sbr.rel (0) target = $region9
    $region8: #{tpu_custom_call.1} parent=1 // pred_region
      %24 = vsyncadd [#allocation5], 0
      %s25 = sshll.u32 %s1, 4
      %s26 = int_to_ptr.hbm [resolvable:$true] %s25
      %s27 = sshll.u32 [#allocation4], 4
      %s28 = int_to_ptr.vmem [resolvable:$true] %s27
      %33 = dma.hbm_to_vmem [thread:$0]  %s26, 640, %s28, [#allocation5], 128, 128, 8
    $region9: #{tpu_custom_call.1} parent=1 // pred_fallthru
      _
    // Predicated region
    $region10: #{tpu_custom_call.1} parent=1 // pred_check
      _
    $region11: #{tpu_custom_call.1} parent=1 // pred_check_branch
      %35 = sbr.rel (0) target = $region13
    $region12: #{tpu_custom_call.1} parent=1 // pred_region
      %37 = vsyncadd [#allocation5], 0
      %s39 = sshll.u32 %s2, 4
      %s40 = int_to_ptr.hbm [resolvable:$true] %s39
      %s41 = sshll.u32 [#allocation6], 4
      %s42 = int_to_ptr.vmem [resolvable:$true] %s41
      %44 = dma.hbm_to_vmem [thread:$0]  %s40, 128, %s42, [#allocation5]
    $region13: #{tpu_custom_call.1} parent=1 // pred_fallthru
      _
    // Predicated region
    $region14: #{tpu_custom_call.1} parent=1 // pred_check
      _
    $region15: #{tpu_custom_call.1} parent=1 // pred_check_branch
      %46 = sbr.rel (0) target = $region17
    $region16: #{tpu_custom_call.1} parent=1 // pred_region
      %48 = dma.done [#allocation3], 128
    $region17: #{tpu_custom_call.1} parent=1 // pred_fallthru
      _
    // Predicated region
    $region18: #{tpu_custom_call.1} parent=1 // pred_check
      _
    $region19: #{tpu_custom_call.1} parent=1 // pred_check_branch
      %50 = sbr.rel (0) target = $region21
    $region20: #{tpu_custom_call.1} parent=1 // pred_region
      %52 = dma.done [#allocation5], 640
    $region21: #{tpu_custom_call.1} parent=1 // pred_fallthru
      _
    // Predicated region
    $region22: #{tpu_custom_call.1} parent=1 // pred_check
      _
    $region23: #{tpu_custom_call.1} parent=1 // pred_check_branch
      %54 = sbr.rel (0) target = $region25
    $region24: #{tpu_custom_call.1} parent=1 // pred_region
      %56 = dma.done [#allocation5], 128
    $region25: #{tpu_custom_call.1} parent=1 // pred_fallthru
      _
    %v57 = vld [vmem:[#allocation2] sm:$0xff]
    %v58 = vmul.f32 %v57, %v57
    %vm59 = vcmask 261120
    %v60 = vsel %vm59, %v58, 0.0
    %61 = vadd.xlane.f32.xlu0 %v60
    %v62 = vpop.xlane.xlu0 %61
    %v63 = vmax.f32 %v62, 1e-08
    %v64 = vrsqrt.pop %v63
    %v65 = vmul.f32 %v64, %v63
    %v66 = vmul.f32 %v65, %v64
    %v67 = vmul.f32 0.5, %v66
    %v68 = vsub.f32 1.5, %v67
    %v69 = vmul.f32 %v64, %v68
    %vm70 = vweird.f32 %v63
    %vm71 = vweird.f32 %v64
    %vm72 = vmor %vm70, %vm71
    %v73 = vsel %vm72, %v64, %v69
    %v74 = vld [vmem:[#allocation4] sm:$0xff]
    %v75 = vmul.f32 %v57, %v74
    %v76 = vsel %vm59, %v75, 0.0
    %77 = vadd.xlane.f32.xlu0 %v76
    %v78 = vpop.xlane.xlu0 %77
    %v79 = vmul.f32 %v78, %v73
    %v80 = vld [vmem:[#allocation6] sm:$0xff]
    %v81 = vmul.f32 %v79, %v80
    %s82 = scalar_lea.vmem [#allocation4], 8
    %v83 = vld [vmem:[%s82] sm:$0xff]
    %v84 = vmul.f32 %v57, %v83
    %v85 = vsel %vm59, %v84, 0.0
    %86 = vadd.xlane.f32.xlu0 %v85
    %v87 = vpop.xlane.xlu0 %86
    %v88 = vmul.f32 %v87, %v73
    %v89 = vmul.f32 %v88, %v80
    %s90 = scalar_lea.vmem [#allocation4], 16
    %v91 = vld [vmem:[%s90] sm:$0xff]
    %v92 = vmul.f32 %v57, %v91
    %v93 = vsel %vm59, %v92, 0.0
    %94 = vadd.xlane.f32.xlu0 %v93
    %v95 = vpop.xlane.xlu0 %94
    %v96 = vmul.f32 %v95, %v73
    %v97 = vmul.f32 %v96, %v80
    %s98 = scalar_lea.vmem [#allocation4], 24
    %v99 = vld [vmem:[%s98] sm:$0xff]
    %v100 = vmul.f32 %v57, %v99
    %v101 = vsel %vm59, %v100, 0.0
    %102 = vadd.xlane.f32.xlu0 %v101
    %v103 = vpop.xlane.xlu0 %102
    %v104 = vmul.f32 %v103, %v73
    %v105 = vmul.f32 %v104, %v80
    %s106 = scalar_lea.vmem [#allocation4], 32
    %v107 = vld [vmem:[%s106] sm:$0xff]
    %v108 = vmul.f32 %v57, %v107
    %v109 = vsel %vm59, %v108, 0.0
    %110 = vadd.xlane.f32.xlu0 %v109
    %v111 = vpop.xlane.xlu0 %110
    %v112 = vmul.f32 %v111, %v73
    %v113 = vmul.f32 %v112, %v80
    %115 = vrot.lane.b32.xlu0 %v89, 127
    %v116 = vpop.permute.xlu0 %115
    %v118 = vmax.f32 %v81, %v116
    %120 = vrot.lane.b32.xlu0 %v97, 126
    %v121 = vpop.permute.xlu0 %120
    %v123 = vmax.f32 %v118, %v121
    %125 = vrot.lane.b32.xlu0 %v105, 125
    %v126 = vpop.permute.xlu0 %125
    %v128 = vmax.f32 %v123, %v126
    %130 = vrot.lane.b32.xlu0 %v113, 124
    %v131 = vpop.permute.xlu0 %130
    %v133 = vmax.f32 %v128, %v131
    %v134 = vsub.f32 %v81, %v133
    %v135 = vmul.f32 %v134, 1.442695
    %v136 = vpow.pop %v135
    %138 = vrot.lane.b32.xlu0 %v133, 1
    %v139 = vpop.permute.xlu0 %138
    %v141 = vsub.f32 %v89, %v139
    %v142 = vmul.f32 %v141, 1.442695
    %v143 = vpow.pop %v142
    %145 = vrot.lane.b32.xlu0 %v143, 127
    %v146 = vpop.permute.xlu0 %145
    %v148 = vadd.f32 %v136, %v146
    %149 = vrot.lane.b32.xlu0 %v133, 2
    %v150 = vpop.permute.xlu0 %149
    %v152 = vsub.f32 %v97, %v150
    %v153 = vmul.f32 %v152, 1.442695
    %v154 = vpow.pop %v153
    %156 = vrot.lane.b32.xlu0 %v154, 126
    %v157 = vpop.permute.xlu0 %156
    %v159 = vadd.f32 %v148, %v157
    %160 = vrot.lane.b32.xlu0 %v133, 3
    %v161 = vpop.permute.xlu0 %160
    %v163 = vsub.f32 %v105, %v161
    %v164 = vmul.f32 %v163, 1.442695
    %v165 = vpow.pop %v164
    %167 = vrot.lane.b32.xlu0 %v165, 125
    %v168 = vpop.permute.xlu0 %167
    %v170 = vadd.f32 %v159, %v168
    %171 = vrot.lane.b32.xlu0 %v133, 4
    %v172 = vpop.permute.xlu0 %171
    %v174 = vsub.f32 %v113, %v172
    %v175 = vmul.f32 %v174, 1.442695
    %v176 = vpow.pop %v175
    %178 = vrot.lane.b32.xlu0 %v176, 124
    %v179 = vpop.permute.xlu0 %178
    %v181 = vadd.f32 %v170, %v179
    %v182 = vlog2.pop %v181
    %v183 = vmul.f32 %v182, 0.6931472
    %v184 = vadd.f32 %v133, %v183
    %v185 = vsub.f32 %v184, %v81
    %vm186 = vcmask 7168
    %187 = vst.msk [vmem:[%s3] sm:$0xff] %vm186, %v185
    // Predicated region
    $region26: #{tpu_custom_call.1} parent=1 // pred_check
      _
    $region27: #{tpu_custom_call.1} parent=1 // pred_check_branch
      %189 = sbr.rel (0) target = $region29
    $region28: #{tpu_custom_call.1} parent=1 // pred_region
      _
    $region29: #{tpu_custom_call.1} parent=1 // pred_fallthru
      _
    // Predicated region
    $region30: #{tpu_custom_call.1} parent=1 // pred_check
      _
    $region31: #{tpu_custom_call.1} parent=1 // pred_check_branch
      %191 = sbr.rel (0) target = $region33
    $region32: #{tpu_custom_call.1} parent=1 // pred_region
      _
    $region33: #{tpu_custom_call.1} parent=1 // pred_fallthru
      _
    %192 = vsyncpa [#allocation3], 1
    %193 = vsyncpa [#allocation5], 1

</llo_original>
